<compile_context>
chip_gen: v7x
topology: tpu7x:2x2x1
jax: 0.10.0
libtpu: 0.0.40
codegen_flags: <defaults>
</compile_context>

<pallas_src>
import functools

import jax
import jax.numpy as jnp
from jax import lax
from jax.experimental import pallas as pl
from jax.experimental.pallas import tpu as pltpu

NEG_SLOPE = 0.2                  # leaky_relu slope used everywhere in the model
BN_EPS = 1e-5
NORM_EPS = 1e-12
BLOCK = 256                      # row / col tile for the attention kernels
VMEM_LIMIT = 32 * 1024 * 1024    # raise v5e's 16 MiB default scoped VMEM limit


# ----------------------------- kernel helpers -------------------------------

def _leaky_relu(x, slope=NEG_SLOPE):
    # valid for 0 < slope < 1: max(x, slope*x) == leaky_relu(x)
    return jnp.maximum(x, slope * x)


def _batchnorm_train(y, eps=BN_EPS):
    # nn.BatchNorm1d in training mode, weight=1 / bias=0 (biased variance).
    mean = jnp.mean(y, axis=0, keepdims=True)
    var = jnp.mean((y - mean) * (y - mean), axis=0, keepdims=True)
    return (y - mean) * lax.rsqrt(var + eps)


# ----------------------------- Pallas kernels -------------------------------

def input_block_kernel(x_ref, w_ref, b_ref, o_ref):
    """nan_to_num -> Linear -> LeakyReLU -> BatchNorm1d (needs full batch)."""
    x = jnp.nan_to_num(x_ref[...], nan=0.0)
    y = jnp.dot(x, w_ref[...], preferred_element_type=jnp.float32) + b_ref[...]
    o_ref[...] = _batchnorm_train(_leaky_relu(y))


def output_block_kernel(x_ref, xskip_ref, w_ref, b_ref, o_ref):
    """x + skip_transform(x_skip) -> BatchNorm1d -> nan_to_num -> L2 normalize."""
    y = x_ref[...] + jnp.dot(xskip_ref[...], w_ref[...],
                             preferred_element_type=jnp.float32) + b_ref[...]
    y = _batchnorm_train(y)
    y = jnp.nan_to_num(y, nan=0.0)
    # F.normalize(p=2, eps=1e-12): x / max(||x||, eps) == x * rsqrt(max(||x||^2, eps^2))
    sumsq = jnp.sum(y * y, axis=1, keepdims=True)
    o_ref[...] = y * lax.rsqrt(jnp.maximum(sumsq, NORM_EPS * NORM_EPS))


def gat_project_kernel(x_ref, w_ref, onesb_ref, asrc_mat_ref, adst_mat_ref,
                       xp_ref, asrc_ref, adst_ref):
    """Row-tiled prologue: xp_aug = x @ W_aug + ones_bias (per-head value slabs
    each followed by a ones column, so the attention kernel gets the softmax
    denominator out of the PV matmul) and per-head attention logits via
    block-diagonal matmuls (one MXU pass for all heads)."""
    x = x_ref[...].astype(jnp.bfloat16)
    w = w_ref[...].astype(jnp.bfloat16)
    xp = jnp.dot(x, w, preferred_element_type=jnp.float32) + onesb_ref[...]
    asrc_ref[...] = jnp.dot(xp, asrc_mat_ref[...],
                            preferred_element_type=jnp.float32)         # [tq, H]
    adst_ref[...] = jnp.dot(xp, adst_mat_ref[...],
                            preferred_element_type=jnp.float32)         # [tq, H]
    xp_ref[...] = xp.astype(xp_ref.dtype)                               # bf16 values


def gat_attention_kernel(adst_ref, asrcT_ref, srcmax_ref, xp_ref, adj_ref,
                         b_ref, o_ref, acc_ref,
                         *, heads, head_dim, concat, fuse_leaky):
    """Dense-mask GATConv tile, grid = (row blocks ["parallel"],
    source blocks ["arbitrary" reduction]).

    e[i,j] = leaky_relu(a_dst[i] + a_src[j]); softmax over sources j with an
    edge j -> i.  The stabilizer m[i] = leaky_relu(a_dst[i] + max_j a_src[j])
    is exact (leaky_relu monotone), so there is no online-softmax bookkeeping.
    The mask multiplies AFTER the exp; m is a per-row constant so it cancels in
    the final division and the result is the exact masked softmax.
    xp carries a ones column per head, so acc[:, ..., last] accumulates the
    softmax denominator on the MXU alongside the weighted values.
    """
    k = pl.program_id(1)
    caug = head_dim + 1          # head slab width in xp / acc (values + ones)

    @pl.when(k == 0)
    def _():
        acc_ref[...] = jnp.zeros_like(acc_ref)

    adjf = adj_ref[...].astype(jnp.float32)                    # [tq, tk] {0,1}
    adst = adst_ref[...]                                        # [tq, H]
    m = _leaky_relu(adst + srcmax_ref[...])                     # exact row max
    # e - m = max(z, s*z) - m = max(z - m, s*z - m); fold m into the row terms.
    row_a = adst - m                                            # [tq, H]
    row_b = NEG_SLOPE * adst - m                                # [tq, H]

    pv_parts = []
    for h in range(heads):                                      # static, small H
        asrc_row = asrcT_ref[h:h + 1, :]                        # [1, tk]
        em = jnp.maximum(row_a[:, h:h + 1] + asrc_row,
                         row_b[:, h:h + 1] + NEG_SLOPE * asrc_row)   # e - m
        p = jnp.exp(em) * adjf                                  # masked, <= 1
        pv_parts.append(jnp.dot(p.astype(jnp.bfloat16),
                                xp_ref[:, h * caug:(h + 1) * caug],
                                preferred_element_type=jnp.float32))  # [tq, C+1]
    # ONE full-width accumulator update per tile (no per-head narrow RMWs).
    acc_ref[...] += jnp.concatenate(pv_parts, axis=1)

    @pl.when(k == pl.num_programs(1) - 1)
    def _():
        outs = []
        for h in range(heads):
            base = h * caug
            inv = pl.reciprocal(acc_ref[:, base + head_dim:base + head_dim + 1],
                                approx=True)                    # 1 / denominator
            outs.append(acc_ref[:, base:base + head_dim] * inv)
        if concat:
            val = jnp.concatenate(outs, axis=1) + b_ref[...]
        else:
            val = outs[0]
            for t in outs[1:]:
                val = val + t
            val = val * (1.0 / heads) + b_ref[...]              # PyG averages heads
        if fuse_leaky:
            val = _leaky_relu(val)
        o_ref[...] = val


# ----------------------------- wrappers --------------------------------------

def _vmem():
    return pl.BlockSpec(memory_space=pltpu.MemorySpace.VMEM)


def input_block(x, w, b):
    n, h = x.shape[0], w.shape[1]
    return pl.pallas_call(
        input_block_kernel,
        out_shape=jax.ShapeDtypeStruct((n, h), jnp.float32),
        in_specs=[_vmem()] * 3,
        out_specs=_vmem(),
        compiler_params=pltpu.CompilerParams(vmem_limit_bytes=VMEM_LIMIT),
    )(x, w, b)


def output_block(x, x_skip, w, b):
    n, d = x.shape
    return pl.pallas_call(
        output_block_kernel,
        out_shape=jax.ShapeDtypeStruct((n, d), jnp.float32),
        in_specs=[_vmem()] * 4,
        out_specs=_vmem(),
        compiler_params=pltpu.CompilerParams(vmem_limit_bytes=VMEM_LIMIT),
    )(x, x_skip, w, b)


def _augment_weight(w, heads, c):
    """w [f_in, H*C] -> w_aug [f_in, H*(C+1)] (zero column per head) plus a
    bias row that puts a literal 1.0 in each head's extra column, so
    x @ w_aug + bias gives [x'_h | 1] per head."""
    f_in = w.shape[0]
    w3 = w.reshape(f_in, heads, c)
    w_aug = jnp.concatenate([w3, jnp.zeros((f_in, heads, 1), w.dtype)], axis=2)
    w_aug = w_aug.reshape(f_in, heads * (c + 1))
    ones_b = jnp.concatenate([jnp.zeros((heads, c), w.dtype),
                              jnp.ones((heads, 1), w.dtype)], axis=1)
    return w_aug, ones_b.reshape(1, heads * (c + 1))


def _block_diag_att_aug(att):
    """att [H, C] -> block-diagonal [H*(C+1), H] matching the augmented xp
    layout (zero row for the ones columns); xp_aug @ A gives all head logits."""
    h, c = att.shape
    att_aug = jnp.concatenate([att, jnp.zeros((h, 1), att.dtype)], axis=1)
    eye = jnp.eye(h, dtype=att.dtype)
    return (att_aug[:, :, None] * eye[:, None, :]).reshape(h * (c + 1), h)


def gat_layer(x, adj, w, att_src, att_dst, b, *, heads, head_dim, concat,
              fuse_leaky, block=BLOCK):
    n_pad, f_in = x.shape
    caug = head_dim + 1
    hc = heads * head_dim
    hc_aug = heads * caug
    out_dim = hc if concat else head_dim
    n_blk = n_pad // block

    w_aug, ones_b = _augment_weight(w, heads, head_dim)
    a_src_mat = _block_diag_att_aug(att_src)
    a_dst_mat = _block_diag_att_aug(att_dst)

    # --- prologue: xp_aug / per-head logits, tiled over rows -----------------
    xp, a_src, a_dst = pl.pallas_call(
        gat_project_kernel,
        out_shape=(jax.ShapeDtypeStruct((n_pad, hc_aug), jnp.bfloat16),
                   jax.ShapeDtypeStruct((n_pad, heads), jnp.float32),
                   jax.ShapeDtypeStruct((n_pad, heads), jnp.float32)),
        grid_spec=pltpu.PrefetchScalarGridSpec(
            num_scalar_prefetch=0, grid=(n_blk,),
            in_specs=[pl.BlockSpec((block, f_in), lambda i: (i, 0)),
                      pl.BlockSpec((f_in, hc_aug), lambda i: (0, 0)),
                      pl.BlockSpec((1, hc_aug), lambda i: (0, 0)),
                      pl.BlockSpec((hc_aug, heads), lambda i: (0, 0)),
                      pl.BlockSpec((hc_aug, heads), lambda i: (0, 0))],
            out_specs=[pl.BlockSpec((block, hc_aug), lambda i: (i, 0)),
                       pl.BlockSpec((block, heads), lambda i: (i, 0)),
                       pl.BlockSpec((block, heads), lambda i: (i, 0))]),
        compiler_params=pltpu.CompilerParams(
            dimension_semantics=("parallel",), vmem_limit_bytes=VMEM_LIMIT),
    )(x, w_aug, ones_b, a_src_mat, a_dst_mat)

    # Tiny O(N) layout glue in XLA: source logits as [H, N] sublane rows, and
    # the per-head source max (any m >= max is exact; padded rows only loosen it).
    a_src_t = jnp.transpose(a_src)                       # (H, N_pad)
    src_max = jnp.max(a_src, axis=0, keepdims=True)      # (1, H)

    kern = functools.partial(gat_attention_kernel, heads=heads,
                             head_dim=head_dim, concat=concat,
                             fuse_leaky=fuse_leaky)
    return pl.pallas_call(
        kern,
        out_shape=jax.ShapeDtypeStruct((n_pad, out_dim), jnp.float32),
        grid_spec=pltpu.PrefetchScalarGridSpec(
            num_scalar_prefetch=0, grid=(n_blk, n_blk),
            in_specs=[pl.BlockSpec((block, heads), lambda i, k: (i, 0)),   # a_dst
                      pl.BlockSpec((heads, block), lambda i, k: (0, k)),   # a_src^T
                      pl.BlockSpec((1, heads), lambda i, k: (0, 0)),       # src max
                      pl.BlockSpec((block, hc_aug), lambda i, k: (k, 0)),  # values|1
                      pl.BlockSpec((block, block), lambda i, k: (i, k)),   # adj int8
                      pl.BlockSpec((1, out_dim), lambda i, k: (0, 0))],    # bias
            out_specs=pl.BlockSpec((block, out_dim), lambda i, k: (i, 0)),
            scratch_shapes=[pltpu.VMEM((block, hc_aug), jnp.float32)]),    # acc
        compiler_params=pltpu.CompilerParams(
            dimension_semantics=("parallel", "arbitrary"),
            vmem_limit_bytes=VMEM_LIMIT),
    )(a_dst, a_src_t, src_max, xp, adj, b)


# ----------------------------- model ----------------------------------------

def improved_gat_forward(x, adj, params, *, heads, hidden_dim, out_dim):
    n = x.shape[0]
    n_pad = adj.shape[0]
    hd = hidden_dim // heads

    # nan_to_num -> Linear -> LeakyReLU -> BatchNorm1 (full-batch stats, un-tiled)
    h = input_block(x, params["w_in"], params["b_in"])
    h = jnp.zeros((n_pad, hidden_dim), jnp.float32).at[:n].set(h)   # pad rows

    # GATConv1 (heads, concat) with the glue LeakyReLU fused into its epilogue
    # (dropout == identity).
    h1 = gat_layer(h, adj, params["w1"], params["att_src1"], params["att_dst1"],
                   params["b1"], heads=heads, head_dim=hd, concat=True,
                   fuse_leaky=True)
    # GATConv2 (1 head, concat=False)
    h2 = gat_layer(h1, adj, params["w2"], params["att_src2"], params["att_dst2"],
                   params["b2"], heads=1, head_dim=out_dim, concat=False,
                   fuse_leaky=False)

    # + skip_transform(x_skip) -> BatchNorm2 -> nan_to_num -> L2 normalize
    return output_block(h2[:n], h1[:n], params["w_skip"], params["b_skip"])


def init_params(key, in_dim, hidden_dim, out_dim, heads):
    hd = hidden_dim // heads
    ks = jax.random.split(key, 8)

    def kaiming(k, shape, fan_in):
        return (jnp.sqrt(2.0 / fan_in)
                * jax.random.normal(k, shape, dtype=jnp.float32))

    return {
        # input_transform (stored as [in, out] so kernels do x @ W)
        "w_in": kaiming(ks[0], (in_dim, hidden_dim), in_dim),
        "b_in": jnp.zeros((1, hidden_dim), jnp.float32),
        # conv1: GATConv(hidden, hidden//heads, heads)
        "w1": kaiming(ks[1], (hidden_dim, heads * hd), hidden_dim),
        "att_src1": kaiming(ks[2], (heads, hd), hd),
        "att_dst1": kaiming(ks[3], (heads, hd), hd),
        "b1": jnp.zeros((1, heads * hd), jnp.float32),
        # conv2: GATConv(hidden, out_dim, heads=1, concat=False)
        "w2": kaiming(ks[4], (hidden_dim, out_dim), hidden_dim),
        "att_src2": kaiming(ks[5], (1, out_dim), out_dim),
        "att_dst2": kaiming(ks[6], (1, out_dim), out_dim),
        "b2": jnp.zeros((1, out_dim), jnp.float32),
        # skip_transform
        "w_skip": kaiming(ks[7], (hidden_dim, out_dim), hidden_dim),
        "b_skip": jnp.zeros((1, out_dim), jnp.float32),
    }


def build_dense_adj(edge_index, num_nodes, padded_nodes):
    """int8 adj[i, j] = 1 iff edge j -> i; self loops on the full padded
    diagonal (GATConv add_self_loops=True; exact for a simple, non-multi graph;
    padded rows/cols never influence real nodes and keep denominators > 0)."""
    src, dst = edge_index[0], edge_index[1]
    adj = jnp.zeros((padded_nodes, padded_nodes), jnp.int8)
    adj = adj.at[dst, src].set(1)
    diag = jnp.arange(padded_nodes)
    adj = adj.at[diag, diag].set(1)
    return adj


# ----------------------------- main ------------------------------------------

if __name__ == "__main__":
    N, IN_DIM, HIDDEN, OUT_DIM, HEADS = 16, 8, 32, 16, 8
    NUM_EDGES = 48
    N_PAD = ((N + BLOCK - 1) // BLOCK) * BLOCK   # pad nodes to the tile size

    key = jax.random.PRNGKey(0)
    k_x, k_src, k_dst, k_w = jax.random.split(key, 4)

    x = jax.random.normal(k_x, (N, IN_DIM), dtype=jnp.float32)
    edge_index = jnp.stack([
        jax.random.randint(k_src, (NUM_EDGES,), 0, N),
        jax.random.randint(k_dst, (NUM_EDGES,), 0, N),
    ])
    adj = build_dense_adj(edge_index, N, N_PAD)
    params = init_params(k_w, IN_DIM, HIDDEN, OUT_DIM, HEADS)

    out = improved_gat_forward(x, adj, params,
                               heads=HEADS, hidden_dim=HIDDEN, out_dim=OUT_DIM)
    out = jax.block_until_ready(out)
    assert out.shape == (N, OUT_DIM)
    assert bool(jnp.all(jnp.isfinite(out)))
    print("KERNEL_OK")
</pallas_src>

<mosaic_0001>
module attributes {stable_mosaic.version = 11 : i64} {
  func.func @input_block_kernel(%arg0: memref<16x8xf32, #tpu.memory_space<vmem>>, %arg1: memref<8x32xf32, #tpu.memory_space<vmem>>, %arg2: memref<1x32xf32, #tpu.memory_space<vmem>>, %arg3: memref<16x32xf32, #tpu.memory_space<vmem>>) attributes {dimension_semantics = [], scalar_prefetch = 0 : i64, scratch_operands = 0 : i64, tpu.core_type = #tpu.core_type<tc>} {
    %c0 = arith.constant 0 : index
    %c0_0 = arith.constant 0 : index
    %0 = vector.load %arg0[%c0, %c0_0] : memref<16x8xf32, #tpu.memory_space<vmem>>, vector<16x8xf32>
    %cst = arith.constant 0.000000e+00 : f32
    %1 = arith.cmpf one, %0, %0 : vector<16x8xf32>
    %2 = vector.broadcast %cst : f32 to vector<16x8xf32>
    %3 = arith.select %1, %2, %0 : vector<16x8xi1>, vector<16x8xf32>
    %cst_1 = arith.constant 0x7F800000 : f32
    %4 = vector.broadcast %cst_1 : f32 to vector<16x8xf32>
    %5 = arith.cmpf oeq, %3, %4 : vector<16x8xf32>
    %cst_2 = arith.constant 3.40282347E+38 : f32
    %6 = vector.broadcast %cst_2 : f32 to vector<16x8xf32>
    %7 = arith.select %5, %6, %3 : vector<16x8xi1>, vector<16x8xf32>
    %cst_3 = arith.constant 0xFF800000 : f32
    %8 = vector.broadcast %cst_3 : f32 to vector<16x8xf32>
    %9 = arith.cmpf oeq, %7, %8 : vector<16x8xf32>
    %cst_4 = arith.constant -3.40282347E+38 : f32
    %10 = vector.broadcast %cst_4 : f32 to vector<16x8xf32>
    %11 = arith.select %9, %10, %7 : vector<16x8xi1>, vector<16x8xf32>
    %c0_5 = arith.constant 0 : index
    %c0_6 = arith.constant 0 : index
    %12 = vector.load %arg1[%c0_5, %c0_6] : memref<8x32xf32, #tpu.memory_space<vmem>>, vector<8x32xf32>
    %cst_7 = arith.constant dense<0.000000e+00> : vector<16x32xf32>
    %13 = tpu.matmul %11, %12, %cst_7 {dimension_numbers = #tpu.dot_dimension_numbers<[1], [0], [0], [1], [0, 0, 1, 1], [], []>} : vector<16x8xf32>, vector<8x32xf32>, vector<16x32xf32> -> vector<16x32xf32>
    %c0_8 = arith.constant 0 : index
    %c0_9 = arith.constant 0 : index
    %14 = vector.load %arg2[%c0_8, %c0_9] : memref<1x32xf32, #tpu.memory_space<vmem>>, vector<1x32xf32>
    %15 = vector.broadcast %14 : vector<1x32xf32> to vector<16x32xf32>
    %16 = arith.addf %13, %15 : vector<16x32xf32>
    %cst_10 = arith.constant 2.000000e-01 : f32
    %17 = vector.broadcast %cst_10 : f32 to vector<16x32xf32>
    %18 = arith.mulf %17, %16 : vector<16x32xf32>
    %19 = arith.maximumf %16, %18 : vector<16x32xf32>
    %cst_11 = arith.constant dense<0.000000e+00> : vector<32xf32>
    %20 = vector.multi_reduction <add>, %19, %cst_11 [0] : vector<16x32xf32> to vector<32xf32>
    %21 = vector.shape_cast %20 : vector<32xf32> to vector<1x32xf32>
    %cst_12 = arith.constant 1.600000e+01 : f32
    %22 = vector.broadcast %cst_12 : f32 to vector<1x32xf32>
    %23 = arith.divf %21, %22 : vector<1x32xf32>
    %24 = vector.broadcast %23 : vector<1x32xf32> to vector<16x32xf32>
    %25 = arith.subf %19, %24 : vector<16x32xf32>
    %26 = vector.broadcast %23 : vector<1x32xf32> to vector<16x32xf32>
    %27 = arith.subf %19, %26 : vector<16x32xf32>
    %28 = arith.mulf %25, %27 : vector<16x32xf32>
    %cst_13 = arith.constant dense<0.000000e+00> : vector<32xf32>
    %29 = vector.multi_reduction <add>, %28, %cst_13 [0] : vector<16x32xf32> to vector<32xf32>
    %30 = vector.shape_cast %29 : vector<32xf32> to vector<1x32xf32>
    %cst_14 = arith.constant 1.600000e+01 : f32
    %31 = vector.broadcast %cst_14 : f32 to vector<1x32xf32>
    %32 = arith.divf %30, %31 : vector<1x32xf32>
    %33 = vector.broadcast %23 : vector<1x32xf32> to vector<16x32xf32>
    %34 = arith.subf %19, %33 : vector<16x32xf32>
    %cst_15 = arith.constant 9.99999974E-6 : f32
    %35 = vector.broadcast %cst_15 : f32 to vector<1x32xf32>
    %36 = arith.addf %32, %35 : vector<1x32xf32>
    %37 = math.rsqrt %36 : vector<1x32xf32>
    %38 = vector.broadcast %37 : vector<1x32xf32> to vector<16x32xf32>
    %39 = arith.mulf %34, %38 : vector<16x32xf32>
    %c0_16 = arith.constant 0 : index
    %c0_17 = arith.constant 0 : index
    %40 = vector.load %arg3[%c0_16, %c0_17] : memref<16x32xf32, #tpu.memory_space<vmem>>, vector<16x32xf32>
    tpu.vector_store %arg3[%c0_16, %c0_17], %39 {strides = array<i32>} : memref<16x32xf32, #tpu.memory_space<vmem>>, vector<16x32xf32>,
    return
  }
}

</mosaic_0001>

<llo_original>
// kernel: tpu_custom_call.1
$region0: #{tpu_custom_call.1}
  #allocation0 [shape = 'u32[]', space=smem, size = 0x4, offset = 0x4, fixed_abs, tag = 'smem constant byte address 0x4 - core index']
  #allocation1 [shape = 'u32[144,128]{1,0:T(1,128)}', space=vmem, size = 0x12000, scoped, tag = 'internal scratch']
  %s0 = inlined_call_operand.vmem [shape: f32[16,8], index: 0, kind: input, shape index: {}]
  %s1 = inlined_call_operand.vmem [shape: f32[8,32], index: 1, kind: input, shape index: {}]
  %s2 = inlined_call_operand.vmem [shape: f32[1,32], index: 2, kind: input, shape index: {}]
  %s3 = inlined_call_operand.hbm [shape: f32[16,32], index: 3, kind: output, shape index: {}]
  %s4 = sld [smem:[#allocation0]]
  $region22: #{tpu_custom_call.1} parent=0
    _
  %s6 = ssub.s32 1, %s4
  %s7 = scalar_select 0, %s6, %s4
  $region1: #{tpu_custom_call.1} parent=0
    #allocation2 [shape = 'u8[8192]{0}', space=vmem, size = 0x2000, scoped, tag = 'output window, operand 0, single buffered']
    #allocation3 [shape = 's32[1]{0}', space=sflag, size = 0x4, scoped, tag = 'scoped memory for tpu_custom_call.1']
    %8 = vsyncpa [#allocation3], 0
    // Predicated region
    $region2: #{tpu_custom_call.1} parent=1 // pred_check
      _
    $region3: #{tpu_custom_call.1} parent=1 // pred_check_branch
      %10 = sbr.rel (0) target = $region5
    $region4: #{tpu_custom_call.1} parent=1 // pred_region
      _
    $region5: #{tpu_custom_call.1} parent=1 // pred_fallthru
      _
    // Predicated region
    $region6: #{tpu_custom_call.1} parent=1 // pred_check
      _
    $region7: #{tpu_custom_call.1} parent=1 // pred_check_branch
      %12 = sbr.rel (0) target = $region9
    $region8: #{tpu_custom_call.1} parent=1 // pred_region
      _
    $region9: #{tpu_custom_call.1} parent=1 // pred_fallthru
      _
    // Predicated region
    $region10: #{tpu_custom_call.1} parent=1 // pred_check
      _
    $region11: #{tpu_custom_call.1} parent=1 // pred_check_branch
      %14 = sbr.rel (0) target = $region13
    $region12: #{tpu_custom_call.1} parent=1 // pred_region
      _
    $region13: #{tpu_custom_call.1} parent=1 // pred_fallthru
      _
    %v15 = vld [vmem:[%s0] sm:$0xff]
    %v16 = vld [vmem:[%s0 + $0x8] sm:$0xff]
    %vm17 = vcmp.ne.f32.partialorder %v15, %v15
    %vm18 = vcmp.ne.f32.partialorder %v16, %v16
    %v19 = vsel %vm17, 0.0, %v15
    %v20 = vsel %vm18, 0.0, %v16
    %vm21 = vcmp.eq.f32.partialorder %v19, inf
    %vm22 = vcmp.eq.f32.partialorder %v20, inf
    %v23 = vsel %vm21, 3.4028235e+38, %v19
    %v24 = vsel %vm22, 3.4028235e+38, %v20
    %vm25 = vcmp.eq.f32.partialorder %v23, -inf
    %vm26 = vcmp.eq.f32.partialorder %v24, -inf
    %v27 = vsel %vm25, -3.4028235e+38, %v23
    %v28 = vsel %vm26, -3.4028235e+38, %v24
    %v29 = vld [vmem:[%s1] sm:$0xff]
    %v30 = vld [vmem:[%s2] sm:$0x1]
    %v32 = vlaneseq
    %v33 = vshrl.u32 %v32, 7
    %v34 = vsub.s32 0, %v33
    %v35 = vrot.slane %v30, %v34
    %vm37 = vcmask 64512
    %v39 = vsel %vm37, %v27, 0
    %v42 = vsel %vm37, %v28, 0
    %44 = vmatprep.subr.mxu0 0.0
    %45 = vmatpush1.msra.mxu0 %v29
    %46 = vmatprep.subr.mxu0 0.0
    %47 = vmatpush1.msra.mxu0 0.0
    %48 = vmatprep.subr.mxu0 0.0
    %49 = vmatpush1.msra.mxu0 0.0
    %50 = vmatprep.subr.mxu0 0.0
    %51 = vmatpush1.msra.mxu0 0.0
    %52 = vmatprep.subr.mxu0 0.0
    %53 = vmatpush1.msra.mxu0 0.0
    %54 = vmatprep.subr.mxu0 0.0
    %55 = vmatpush1.msra.mxu0 0.0
    %56 = vmatprep.subr.mxu0 0.0
    %57 = vmatpush1.msra.mxu0 0.0
    %58 = vmatprep.subr.mxu0 0.0
    %59 = vmatpush1.msra.mxu0 0.0
    %60 = vmatprep.subr.mxu0 0.0
    %61 = vmatpush1.msra.mxu0 0.0
    %62 = vmatprep.subr.mxu0 0.0
    %63 = vmatpush1.msra.mxu0 0.0
    %64 = vmatprep.subr.mxu0 0.0
    %65 = vmatpush1.msra.mxu0 0.0
    %66 = vmatprep.subr.mxu0 0.0
    %67 = vmatpush1.msra.mxu0 0.0
    %68 = vmatprep.subr.mxu0 0.0
    %69 = vmatpush1.msra.mxu0 0.0
    %70 = vmatprep.subr.mxu0 0.0
    %71 = vmatpush1.msra.mxu0 0.0
    %72 = vmatprep.subr.mxu0 0.0
    %73 = vmatpush1.msra.mxu0 0.0
    %74 = vmatprep.subr.mxu0 0.0
    %75 = vmatpush1.msra.mxu0 0.0
    %76 = vmatprep.subr.mxu0 0.0
    %77 = vmatpush1.msra.mxu0 0.0
    %78 = vmatprep.subr.mxu0 0.0
    %79 = vmatpush1.msra.mxu0 0.0
    %80 = vmatprep.subr.mxu0 0.0
    %81 = vmatpush1.msra.mxu0 0.0
    %82 = vmatprep.subr.mxu0 0.0
    %83 = vmatpush1.msra.mxu0 0.0
    %84 = vmatprep.subr.mxu0 0.0
    %85 = vmatpush1.msra.mxu0 0.0
    %86 = vmatprep.subr.mxu0 0.0
    %87 = vmatpush1.msra.mxu0 0.0
    %88 = vmatprep.subr.mxu0 0.0
    %89 = vmatpush1.msra.mxu0 0.0
    %90 = vmatprep.subr.mxu0 0.0
    %91 = vmatpush1.msra.mxu0 0.0
    %92 = vmatprep.subr.mxu0 0.0
    %93 = vmatpush1.msra.mxu0 0.0
    %94 = vmatprep.subr.mxu0 0.0
    %95 = vmatpush1.msra.mxu0 0.0
    %96 = vmatprep.subr.mxu0 0.0
    %97 = vmatpush1.msra.mxu0 0.0
    %98 = vmatprep.subr.mxu0 0.0
    %99 = vmatpush1.msra.mxu0 0.0
    %100 = vmatprep.subr.mxu0 0.0
    %101 = vmatpush1.msra.mxu0 0.0
    %102 = vmatprep.subr.mxu0 0.0
    %103 = vmatpush1.msra.mxu0 0.0
    %104 = vmatprep.subr.mxu0 0.0
    %105 = vmatpush1.msra.mxu0 0.0
    %106 = vmatprep.subr.mxu0 0.0
    %107 = vmatpush1.msra.mxu0 0.0
    %108 = vmatprep.mubr.f32.mxu0 0.0
    %109 = vmatmul.mubr.f32.gmra.mrb[0].mxu0 %v39
    %v110 = vpop.f32.mrb[0].mxu0
    %v111 = vadd.f32 %v35, %v110
    %v112 = vpop.f32.mrb[0].mxu0
    %113 = vmatprep.mubr.f32.mxu0 0.0
    %114 = vmatmul.mubr.f32.gmra.mrb[0].mxu0 %v42
    %v115 = vpop.f32.mrb[0].mxu0
    %v116 = vadd.f32 %v35, %v115
    %v117 = vpop.f32.mrb[0].mxu0
    %118 = vdwg.mxu0
    %v119 = vmul.f32 %v111, 0.2
    %v120 = vmul.f32 %v116, 0.2
    %v121 = vmax.f32 %v111, %v119
    %v122 = vmax.f32 %v116, %v120
    %vm123 = vcmask 261120
    %v124 = vsel %vm123, %v121, 0.0
    %v125 = vsel %vm123, %v122, 0.0
    %v126 = vadd.f32 %v124, %v125
    %v127 = vrot.slane %v126, 4
    %v128 = vadd.f32 %v126, %v127
    %v129 = vrot.slane %v128, 2
    %v130 = vadd.f32 %v128, %v129
    %v131 = vrot.slane %v130, 1
    %v132 = vadd.f32 %v130, %v131
    %v133 = vrcp.pop 16.0
    %v134 = vmul.f32 %v132, %v133
    %v135 = vsub.f32 %v121, %v134
    %v136 = vsub.f32 %v122, %v134
    %v137 = vmul.f32 %v135, %v135
    %v138 = vmul.f32 %v136, %v136
    %v139 = vsel %vm123, %v137, 0.0
    %v140 = vsel %vm123, %v138, 0.0
    %v141 = vadd.f32 %v139, %v140
    %v142 = vrot.slane %v141, 4
    %v143 = vadd.f32 %v141, %v142
    %v144 = vrot.slane %v143, 2
    %v145 = vadd.f32 %v143, %v144
    %v146 = vrot.slane %v145, 1
    %v147 = vadd.f32 %v145, %v146
    %v148 = vmul.f32 %v147, %v133
    %v149 = vadd.f32 %v148, 1e-05
    %v150 = vrsqrt.pop %v149
    %v151 = vmul.f32 %v135, %v150
    %v152 = vmul.f32 %v136, %v150
    %153 = vst.msk [vmem:[#allocation2] sm:$0xff] %vm123, %v151
    %154 = vst.msk [vmem:[#allocation2 + $0x8] sm:$0xff] %vm123, %v152
    // Predicated region
    $region14: #{tpu_custom_call.1} parent=1 // pred_check
      _
    $region15: #{tpu_custom_call.1} parent=1 // pred_check_branch
      %156 = sbr.rel (0) target = $region17
    $region16: #{tpu_custom_call.1} parent=1 // pred_region
      %s158 = ssub.s32 256, 256
      %159 = vsyncadd [#allocation3], %s158
      %s160 = sshll.u32 [#allocation2], 4
      %s161 = int_to_ptr.vmem [resolvable:$true] %s160
      %166 = dma.vmem_to_hbm [thread:$0]  %s161, 256, %s3, [#allocation3], 128, 128, 8
    $region17: #{tpu_custom_call.1} parent=1 // pred_fallthru
      _
    // Predicated region
    $region18: #{tpu_custom_call.1} parent=1 // pred_check
      _
    $region19: #{tpu_custom_call.1} parent=1 // pred_check_branch
      %168 = sbr.rel (0) target = $region21
    $region20: #{tpu_custom_call.1} parent=1 // pred_region
      %169 = dma.done [#allocation3], 256
    $region21: #{tpu_custom_call.1} parent=1 // pred_fallthru
      _
    %170 = vsyncpa [#allocation3], 1

</llo_original>
